<compile_context>
chip_gen: v5e
topology: v5e:2x2
jax: 0.10.0
libtpu: 0.0.40
codegen_flags: <defaults>
</compile_context>

<pallas_src>
import functools

import jax
import jax.numpy as jnp
from jax.experimental import pallas as pl
from jax.experimental.pallas import tpu as pltpu


# ---------------------------------------------------------------------------
# Fused Pallas kernel: 1x1 conv -> 3x3 conv -> 3x3 conv (+BN+ReLU each) + cat
# ---------------------------------------------------------------------------
def _cat_bottleneck_kernel(x_ref, w0_ref, s0_ref, b0_ref,
                           w1_ref, s1_ref, b1_ref,
                           w2_ref, s2_ref, b2_ref,
                           o_ref, pad1_ref, pad2_ref, *, H, W):
    HW = H * W
    padL = W + 1  # flat-index pad width so every 3x3 tap is a static slice

    # Column-validity masks for the kx=0 / kx=2 taps.  Row out-of-range taps
    # are handled automatically by the zero padding of the flat buffer.
    col = jax.lax.broadcasted_iota(jnp.int32, (1, HW), 1) % W
    not_first_col = col != 0          # mask for kx == 0 taps
    not_last_col = col != (W - 1)     # mask for kx == 2 taps

    def conv3x3_bn_relu(y, pad_ref, w_ref, s_ref, b_ref):
        # y: (Cin, HW) activations.  w_ref: (Cout, 9*Cin) im2col weights.
        # Zero padding (padding=1) done entirely in VMEM: zero the scratch,
        # store the activations at offset padL.
        pad_ref[...] = jnp.zeros_like(pad_ref)
        pad_ref[:, padL:padL + HW] = y

        # im2col: gather the 9 shifted taps as static lane slices and run ONE
        # MXU matmul with K = 9*Cin instead of nine tiny K=Cin matmuls.
        taps = []
        for ky in range(3):
            for kx in range(3):
                off = padL + (ky - 1) * W + (kx - 1)
                tap = pad_ref[:, off:off + HW]
                if kx == 0:
                    tap = jnp.where(not_first_col, tap, 0.0)
                elif kx == 2:
                    tap = jnp.where(not_last_col, tap, 0.0)
                taps.append(tap)
        slab = jnp.concatenate(taps, axis=0)                   # (9*Cin, HW)
        z = jnp.dot(w_ref[...], slab, preferred_element_type=jnp.float32)
        return jnp.maximum(z * s_ref[...] + b_ref[...], 0.0)   # (Cout, HW)

    # conv0: 1x1 conv + BN + ReLU.  Channels-first so HW sits on lanes.
    x = x_ref[0]                                               # (Cin, HW)
    y1 = jnp.dot(w0_ref[...], x, preferred_element_type=jnp.float32)
    y1 = jnp.maximum(y1 * s0_ref[...] + b0_ref[...], 0.0)      # (C1, HW)

    # conv1 / conv2: 3x3 convs chained fully in VMEM.
    y2 = conv3x3_bn_relu(y1, pad1_ref, w1_ref, s1_ref, b1_ref)  # (C2, HW)
    y3 = conv3x3_bn_relu(y2, pad2_ref, w2_ref, s2_ref, b2_ref)  # (C3, HW)

    # Fused channel concat: single lane-dense store of the whole output block.
    out_all = jnp.concatenate([y1, y2, y3], axis=0)             # (Ct, HW)
    o_ref[...] = out_all.reshape((1,) + out_all.shape).astype(o_ref.dtype)


# ---------------------------------------------------------------------------
# Wrapper: NCHW in / NCHW out, one pallas_call for the whole bottleneck
# ---------------------------------------------------------------------------
def cat_bottleneck_forward(x_nchw, params):
    N, Cin, H, W = x_nchw.shape
    HW = H * W

    w0, s0, b0 = params["conv0"]   # (1,1,Cin,C1), (C1,), (C1,)
    w1, s1, b1 = params["conv1"]   # (3,3,C1,C2)
    w2, s2, b2 = params["conv2"]   # (3,3,C2,C3)
    C1, C2, C3 = w0.shape[3], w1.shape[3], w2.shape[3]
    Ct = C1 + C2 + C3

    # Weight repacking for channels-first matmuls (tiny, wrapper-side).
    w0m = w0.reshape(Cin, C1).T                                  # (C1, Cin)
    w1m = jnp.transpose(w1, (3, 0, 1, 2)).reshape(C2, 9 * C1)    # im2col
    w2m = jnp.transpose(w2, (3, 0, 1, 2)).reshape(C3, 9 * C2)

    # Free reshape: NCHW stays NCHW, spatial flattened onto the lane axis.
    x2 = x_nchw.reshape(N, Cin, HW)

    kern = functools.partial(_cat_bottleneck_kernel, H=H, W=W)
    out = pl.pallas_call(
        kern,
        out_shape=jax.ShapeDtypeStruct((N, Ct, HW), x_nchw.dtype),
        grid=(N,),
        in_specs=[
            pl.BlockSpec((1, Cin, HW), lambda n: (n, 0, 0)),
            pl.BlockSpec((C1, Cin), lambda n: (0, 0)),
            pl.BlockSpec((C1, 1), lambda n: (0, 0)),
            pl.BlockSpec((C1, 1), lambda n: (0, 0)),
            pl.BlockSpec((C2, 9 * C1), lambda n: (0, 0)),
            pl.BlockSpec((C2, 1), lambda n: (0, 0)),
            pl.BlockSpec((C2, 1), lambda n: (0, 0)),
            pl.BlockSpec((C3, 9 * C2), lambda n: (0, 0)),
            pl.BlockSpec((C3, 1), lambda n: (0, 0)),
            pl.BlockSpec((C3, 1), lambda n: (0, 0)),
        ],
        out_specs=pl.BlockSpec((1, Ct, HW), lambda n: (n, 0, 0)),
        scratch_shapes=[
            pltpu.VMEM((C1, HW + 2 * W + 2), jnp.float32),  # padded out1
            pltpu.VMEM((C2, HW + 2 * W + 2), jnp.float32),  # padded out2
        ],
        compiler_params=pltpu.CompilerParams(
            dimension_semantics=("parallel",)),
    )(x2,
      w0m, s0.reshape(C1, 1), b0.reshape(C1, 1),
      w1m, s1.reshape(C2, 1), b1.reshape(C2, 1),
      w2m, s2.reshape(C3, 1), b2.reshape(C3, 1))

    return out.reshape(N, Ct, H, W)   # free reshape back to NCHW


# ---------------------------------------------------------------------------
# Parameter construction (deterministic, synthetic)
# ---------------------------------------------------------------------------
def make_convx_params(key, cin, cout, kernel):
    k1, k2, k3, k4, k5 = jax.random.split(key, 5)
    w = 0.1 * jax.random.normal(k1, (kernel, kernel, cin, cout), jnp.float32)
    gamma = 1.0 + 0.1 * jax.random.normal(k2, (cout,), jnp.float32)
    beta = 0.1 * jax.random.normal(k3, (cout,), jnp.float32)
    mean = 0.1 * jax.random.normal(k4, (cout,), jnp.float32)
    var = jnp.abs(jax.random.normal(k5, (cout,), jnp.float32)) + 0.5
    eps = 1e-5
    scale = gamma / jnp.sqrt(var + eps)
    bias = beta - mean * scale
    return w, scale, bias


def make_cat_bottleneck_params(key, in_planes, out_planes):
    k0, k1, k2 = jax.random.split(key, 3)
    return {
        "conv0": make_convx_params(k0, in_planes, out_planes // 2, 1),
        "conv1": make_convx_params(k1, out_planes // 2, out_planes // 4, 3),
        "conv2": make_convx_params(k2, out_planes // 4, out_planes // 4, 3),
    }


# ---------------------------------------------------------------------------
# Pure-JAX reference for validation
# ---------------------------------------------------------------------------
def _ref_convx(x_nchw, w_hwio, scale, bias, kernel):
    pad = kernel // 2
    y = jax.lax.conv_general_dilated(
        x_nchw, w_hwio, window_strides=(1, 1),
        padding=((pad, pad), (pad, pad)),
        dimension_numbers=("NCHW", "HWIO", "NCHW"))
    y = y * scale.reshape(1, -1, 1, 1) + bias.reshape(1, -1, 1, 1)
    return jnp.maximum(y, 0.0)


def cat_bottleneck_reference(x_nchw, params):
    w0, s0, b0 = params["conv0"]
    out1 = _ref_convx(x_nchw, w0, s0, b0, 1)
    w1, s1, b1 = params["conv1"]
    out2 = _ref_convx(out1, w1, s1, b1, 3)
    w2, s2, b2 = params["conv2"]
    out3 = _ref_convx(out2, w2, s2, b2, 3)
    return jnp.concatenate([out1, out2, out3], axis=1)


if __name__ == "__main__":
    key = jax.random.PRNGKey(0)
    kx, kp = jax.random.split(key)

    N, in_planes, out_planes, H, W = 2, 4, 16, 16, 16
    x = jax.random.normal(kx, (N, in_planes, H, W), jnp.float32)  # NCHW
    params = make_cat_bottleneck_params(kp, in_planes, out_planes)

    out = jax.block_until_ready(jax.jit(cat_bottleneck_forward)(x, params))
    ref = jax.block_until_ready(cat_bottleneck_reference(x, params))

    assert out.shape == (N, out_planes, H, W), out.shape
    assert jnp.allclose(out, ref, atol=1e-2, rtol=1e-2), (
        float(jnp.max(jnp.abs(out - ref))))

    print("KERNEL_OK")
</pallas_src>

<mosaic_0001>
module attributes {stable_mosaic.version = 11 : i64} {
  func.func @_cat_bottleneck_kernel(%arg0: i32, %arg1: memref<1x4x256xf32, #tpu.memory_space<vmem>>, %arg2: memref<8x4xf32, #tpu.memory_space<vmem>>, %arg3: memref<8x1xf32, #tpu.memory_space<vmem>>, %arg4: memref<8x1xf32, #tpu.memory_space<vmem>>, %arg5: memref<4x72xf32, #tpu.memory_space<vmem>>, %arg6: memref<4x1xf32, #tpu.memory_space<vmem>>, %arg7: memref<4x1xf32, #tpu.memory_space<vmem>>, %arg8: memref<4x36xf32, #tpu.memory_space<vmem>>, %arg9: memref<4x1xf32, #tpu.memory_space<vmem>>, %arg10: memref<4x1xf32, #tpu.memory_space<vmem>>, %arg11: memref<1x16x256xf32, #tpu.memory_space<vmem>>, %arg12: memref<8x290xf32, #tpu.memory_space<vmem>>, %arg13: memref<4x290xf32, #tpu.memory_space<vmem>>) attributes {dimension_semantics = [#tpu.dimension_semantics<parallel>], iteration_bounds = array<i64: 2>, scalar_prefetch = 0 : i64, scratch_operands = 2 : i64, tpu.core_type = #tpu.core_type<tc>, window_params = [{transform_indices = @transform_0, window_bounds = array<i64: 1, 4, 256>}, {pipeline_mode = #tpu.pipeline_mode<synchronous>, transform_indices = @transform_1, window_bounds = array<i64: 8, 4>}, {pipeline_mode = #tpu.pipeline_mode<synchronous>, transform_indices = @transform_2, window_bounds = array<i64: 8, 1>}, {pipeline_mode = #tpu.pipeline_mode<synchronous>, transform_indices = @transform_3, window_bounds = array<i64: 8, 1>}, {pipeline_mode = #tpu.pipeline_mode<synchronous>, transform_indices = @transform_4, window_bounds = array<i64: 4, 72>}, {pipeline_mode = #tpu.pipeline_mode<synchronous>, transform_indices = @transform_5, window_bounds = array<i64: 4, 1>}, {pipeline_mode = #tpu.pipeline_mode<synchronous>, transform_indices = @transform_6, window_bounds = array<i64: 4, 1>}, {pipeline_mode = #tpu.pipeline_mode<synchronous>, transform_indices = @transform_7, window_bounds = array<i64: 4, 36>}, {pipeline_mode = #tpu.pipeline_mode<synchronous>, transform_indices = @transform_8, window_bounds = array<i64: 4, 1>}, {pipeline_mode = #tpu.pipeline_mode<synchronous>, transform_indices = @transform_9, window_bounds = array<i64: 4, 1>}, {transform_indices = @transform_10, window_bounds = array<i64: 1, 16, 256>}]} {
    %0 = tpu.iota {dimensions = array<i32: 1>} : vector<1x256xi32>
    %c16_i32 = arith.constant 16 : i32
    %c0_i32 = arith.constant 0 : i32
    %1 = arith.cmpi eq, %c16_i32, %c0_i32 : i32
    %c1_i32 = arith.constant 1 : i32
    %2 = arith.select %1, %c1_i32, %c16_i32 : i32
    %3 = vector.broadcast %2 : i32 to vector<1x256xi32>
    %4 = arith.remsi %0, %3 : vector<1x256xi32>
    %c0_i32_0 = arith.constant 0 : i32
    %5 = vector.broadcast %c0_i32_0 : i32 to vector<1x256xi32>
    %6 = arith.cmpi ne, %4, %5 : vector<1x256xi32>
    %c0_i32_1 = arith.constant 0 : i32
    %7 = vector.broadcast %c0_i32_1 : i32 to vector<1x256xi32>
    %8 = arith.cmpi slt, %4, %7 : vector<1x256xi32>
    %c0_i32_2 = arith.constant 0 : i32
    %9 = arith.cmpi slt, %2, %c0_i32_2 : i32
    %10 = vector.broadcast %9 : i1 to vector<1x256xi1>
    %11 = vector.broadcast %10 : vector<1x256xi1> to vector<1x256xi1>
    %12 = arith.xori %8, %11 : vector<1x256xi1>
    %13 = arith.andi %12, %6 : vector<1x256xi1>
    %14 = vector.broadcast %2 : i32 to vector<1x256xi32>
    %15 = arith.addi %4, %14 : vector<1x256xi32>
    %16 = arith.select %13, %15, %4 : vector<1x256xi1>, vector<1x256xi32>
    %c0_i32_3 = arith.constant 0 : i32
    %17 = vector.broadcast %c0_i32_3 : i32 to vector<1x256xi32>
    %18 = arith.cmpi ne, %16, %17 : vector<1x256xi32>
    %c15_i32 = arith.constant 15 : i32
    %19 = vector.broadcast %c15_i32 : i32 to vector<1x256xi32>
    %20 = arith.cmpi ne, %16, %19 : vector<1x256xi32>
    %c0 = arith.constant 0 : index
    %c0_4 = arith.constant 0 : index
    %c0_5 = arith.constant 0 : index
    %21 = vector.load %arg1[%c0, %c0_4, %c0_5] : memref<1x4x256xf32, #tpu.memory_space<vmem>>, vector<1x4x256xf32>
    %22 = vector.shape_cast %21 : vector<1x4x256xf32> to vector<4x256xf32>
    %c0_6 = arith.constant 0 : index
    %c0_7 = arith.constant 0 : index
    %23 = vector.load %arg2[%c0_6, %c0_7] : memref<8x4xf32, #tpu.memory_space<vmem>>, vector<8x4xf32>
    %cst = arith.constant dense<0.000000e+00> : vector<8x256xf32>
    %24 = tpu.matmul %23, %22, %cst {dimension_numbers = #tpu.dot_dimension_numbers<[1], [0], [0], [1], [0, 0, 1, 1], [], []>} : vector<8x4xf32>, vector<4x256xf32>, vector<8x256xf32> -> vector<8x256xf32>
    %c0_8 = arith.constant 0 : index
    %c0_9 = arith.constant 0 : index
    %25 = vector.load %arg3[%c0_8, %c0_9] : memref<8x1xf32, #tpu.memory_space<vmem>>, vector<8x1xf32>
    %26 = vector.broadcast %25 : vector<8x1xf32> to vector<8x256xf32>
    %27 = arith.mulf %24, %26 : vector<8x256xf32>
    %c0_10 = arith.constant 0 : index
    %c0_11 = arith.constant 0 : index
    %28 = vector.load %arg4[%c0_10, %c0_11] : memref<8x1xf32, #tpu.memory_space<vmem>>, vector<8x1xf32>
    %29 = vector.broadcast %28 : vector<8x1xf32> to vector<8x256xf32>
    %30 = arith.addf %27, %29 : vector<8x256xf32>
    %cst_12 = arith.constant 0.000000e+00 : f32
    %31 = vector.broadcast %cst_12 : f32 to vector<8x256xf32>
    %32 = arith.maximumf %30, %31 : vector<8x256xf32>
    %cst_13 = arith.constant 0.000000e+00 : f32
    %33 = vector.broadcast %cst_13 : f32 to vector<8x290xf32>
    %c0_14 = arith.constant 0 : index
    %c0_15 = arith.constant 0 : index
    %34 = vector.load %arg12[%c0_14, %c0_15] : memref<8x290xf32, #tpu.memory_space<vmem>>, vector<8x290xf32>
    tpu.vector_store %arg12[%c0_14, %c0_15], %33 {strides = array<i32>} : memref<8x290xf32, #tpu.memory_space<vmem>>, vector<8x290xf32>,
    %c0_16 = arith.constant 0 : index
    %c17 = arith.constant 17 : index
    %35 = vector.load %arg12[%c0_16, %c17] : memref<8x290xf32, #tpu.memory_space<vmem>>, vector<8x256xf32>
    tpu.vector_store %arg12[%c0_16, %c17], %32 {strides = array<i32>} : memref<8x290xf32, #tpu.memory_space<vmem>>, vector<8x256xf32>,
    %c0_17 = arith.constant 0 : index
    %c0_18 = arith.constant 0 : index
    %36 = vector.load %arg12[%c0_17, %c0_18] : memref<8x290xf32, #tpu.memory_space<vmem>>, vector<8x256xf32>
    %cst_19 = arith.constant 0.000000e+00 : f32
    %37 = vector.shape_cast %18 : vector<1x256xi1> to vector<1x256xi1>
    %38 = vector.broadcast %37 : vector<1x256xi1> to vector<8x256xi1>
    %39 = vector.broadcast %cst_19 : f32 to vector<8x256xf32>
    %40 = arith.select %38, %36, %39 : vector<8x256xi1>, vector<8x256xf32>
    %c0_20 = arith.constant 0 : index
    %c1 = arith.constant 1 : index
    %41 = vector.load %arg12[%c0_20, %c1] : memref<8x290xf32, #tpu.memory_space<vmem>>, vector<8x256xf32>
    %c0_21 = arith.constant 0 : index
    %c2 = arith.constant 2 : index
    %42 = vector.load %arg12[%c0_21, %c2] : memref<8x290xf32, #tpu.memory_space<vmem>>, vector<8x256xf32>
    %cst_22 = arith.constant 0.000000e+00 : f32
    %43 = vector.shape_cast %20 : vector<1x256xi1> to vector<1x256xi1>
    %44 = vector.broadcast %43 : vector<1x256xi1> to vector<8x256xi1>
    %45 = vector.broadcast %cst_22 : f32 to vector<8x256xf32>
    %46 = arith.select %44, %42, %45 : vector<8x256xi1>, vector<8x256xf32>
    %c0_23 = arith.constant 0 : index
    %c16 = arith.constant 16 : index
    %47 = vector.load %arg12[%c0_23, %c16] : memref<8x290xf32, #tpu.memory_space<vmem>>, vector<8x256xf32>
    %cst_24 = arith.constant 0.000000e+00 : f32
    %48 = vector.shape_cast %18 : vector<1x256xi1> to vector<1x256xi1>
    %49 = vector.broadcast %48 : vector<1x256xi1> to vector<8x256xi1>
    %50 = vector.broadcast %cst_24 : f32 to vector<8x256xf32>
    %51 = arith.select %49, %47, %50 : vector<8x256xi1>, vector<8x256xf32>
    %c0_25 = arith.constant 0 : index
    %c17_26 = arith.constant 17 : index
    %52 = vector.load %arg12[%c0_25, %c17_26] : memref<8x290xf32, #tpu.memory_space<vmem>>, vector<8x256xf32>
    %c0_27 = arith.constant 0 : index
    %c18 = arith.constant 18 : index
    %53 = vector.load %arg12[%c0_27, %c18] : memref<8x290xf32, #tpu.memory_space<vmem>>, vector<8x256xf32>
    %cst_28 = arith.constant 0.000000e+00 : f32
    %54 = vector.shape_cast %20 : vector<1x256xi1> to vector<1x256xi1>
    %55 = vector.broadcast %54 : vector<1x256xi1> to vector<8x256xi1>
    %56 = vector.broadcast %cst_28 : f32 to vector<8x256xf32>
    %57 = arith.select %55, %53, %56 : vector<8x256xi1>, vector<8x256xf32>
    %c0_29 = arith.constant 0 : index
    %c32 = arith.constant 32 : index
    %58 = vector.load %arg12[%c0_29, %c32] : memref<8x290xf32, #tpu.memory_space<vmem>>, vector<8x256xf32>
    %cst_30 = arith.constant 0.000000e+00 : f32
    %59 = vector.shape_cast %18 : vector<1x256xi1> to vector<1x256xi1>
    %60 = vector.broadcast %59 : vector<1x256xi1> to vector<8x256xi1>
    %61 = vector.broadcast %cst_30 : f32 to vector<8x256xf32>
    %62 = arith.select %60, %58, %61 : vector<8x256xi1>, vector<8x256xf32>
    %c0_31 = arith.constant 0 : index
    %c33 = arith.constant 33 : index
    %63 = vector.load %arg12[%c0_31, %c33] : memref<8x290xf32, #tpu.memory_space<vmem>>, vector<8x256xf32>
    %c0_32 = arith.constant 0 : index
    %c34 = arith.constant 34 : index
    %64 = vector.load %arg12[%c0_32, %c34] : memref<8x290xf32, #tpu.memory_space<vmem>>, vector<8x256xf32>
    %cst_33 = arith.constant 0.000000e+00 : f32
    %65 = vector.shape_cast %20 : vector<1x256xi1> to vector<1x256xi1>
    %66 = vector.broadcast %65 : vector<1x256xi1> to vector<8x256xi1>
    %67 = vector.broadcast %cst_33 : f32 to vector<8x256xf32>
    %68 = arith.select %66, %64, %67 : vector<8x256xi1>, vector<8x256xf32>
    %69 = tpu.concatenate %40, %41, %46, %51, %52, %57, %62, %63, %68 in 0 : vector<8x256xf32>, vector<8x256xf32>, vector<8x256xf32>, vector<8x256xf32>, vector<8x256xf32>, vector<8x256xf32>, vector<8x256xf32>, vector<8x256xf32>, vector<8x256xf32> -> vector<72x256xf32>
    %c0_34 = arith.constant 0 : index
    %c0_35 = arith.constant 0 : index
    %70 = vector.load %arg5[%c0_34, %c0_35] : memref<4x72xf32, #tpu.memory_space<vmem>>, vector<4x72xf32>
    %cst_36 = arith.constant dense<0.000000e+00> : vector<4x256xf32>
    %71 = tpu.matmul %70, %69, %cst_36 {dimension_numbers = #tpu.dot_dimension_numbers<[1], [0], [0], [1], [0, 0, 1, 1], [], []>} : vector<4x72xf32>, vector<72x256xf32>, vector<4x256xf32> -> vector<4x256xf32>
    %c0_37 = arith.constant 0 : index
    %c0_38 = arith.constant 0 : index
    %72 = vector.load %arg6[%c0_37, %c0_38] : memref<4x1xf32, #tpu.memory_space<vmem>>, vector<4x1xf32>
    %73 = vector.broadcast %72 : vector<4x1xf32> to vector<4x256xf32>
    %74 = arith.mulf %71, %73 : vector<4x256xf32>
    %c0_39 = arith.constant 0 : index
    %c0_40 = arith.constant 0 : index
    %75 = vector.load %arg7[%c0_39, %c0_40] : memref<4x1xf32, #tpu.memory_space<vmem>>, vector<4x1xf32>
    %76 = vector.broadcast %75 : vector<4x1xf32> to vector<4x256xf32>
    %77 = arith.addf %74, %76 : vector<4x256xf32>
    %cst_41 = arith.constant 0.000000e+00 : f32
    %78 = vector.broadcast %cst_41 : f32 to vector<4x256xf32>
    %79 = arith.maximumf %77, %78 : vector<4x256xf32>
    %cst_42 = arith.constant 0.000000e+00 : f32
    %80 = vector.broadcast %cst_42 : f32 to vector<4x290xf32>
    %c0_43 = arith.constant 0 : index
    %c0_44 = arith.constant 0 : index
    %81 = vector.load %arg13[%c0_43, %c0_44] : memref<4x290xf32, #tpu.memory_space<vmem>>, vector<4x290xf32>
    tpu.vector_store %arg13[%c0_43, %c0_44], %80 {strides = array<i32>} : memref<4x290xf32, #tpu.memory_space<vmem>>, vector<4x290xf32>,
    %c0_45 = arith.constant 0 : index
    %c17_46 = arith.constant 17 : index
    %82 = vector.load %arg13[%c0_45, %c17_46] : memref<4x290xf32, #tpu.memory_space<vmem>>, vector<4x256xf32>
    tpu.vector_store %arg13[%c0_45, %c17_46], %79 {strides = array<i32>} : memref<4x290xf32, #tpu.memory_space<vmem>>, vector<4x256xf32>,
    %c0_47 = arith.constant 0 : index
    %c0_48 = arith.constant 0 : index
    %83 = vector.load %arg13[%c0_47, %c0_48] : memref<4x290xf32, #tpu.memory_space<vmem>>, vector<4x256xf32>
    %cst_49 = arith.constant 0.000000e+00 : f32
    %84 = vector.shape_cast %18 : vector<1x256xi1> to vector<1x256xi1>
    %85 = vector.broadcast %84 : vector<1x256xi1> to vector<4x256xi1>
    %86 = vector.broadcast %cst_49 : f32 to vector<4x256xf32>
    %87 = arith.select %85, %83, %86 : vector<4x256xi1>, vector<4x256xf32>
    %c0_50 = arith.constant 0 : index
    %c1_51 = arith.constant 1 : index
    %88 = vector.load %arg13[%c0_50, %c1_51] : memref<4x290xf32, #tpu.memory_space<vmem>>, vector<4x256xf32>
    %c0_52 = arith.constant 0 : index
    %c2_53 = arith.constant 2 : index
    %89 = vector.load %arg13[%c0_52, %c2_53] : memref<4x290xf32, #tpu.memory_space<vmem>>, vector<4x256xf32>
    %cst_54 = arith.constant 0.000000e+00 : f32
    %90 = vector.shape_cast %20 : vector<1x256xi1> to vector<1x256xi1>
    %91 = vector.broadcast %90 : vector<1x256xi1> to vector<4x256xi1>
    %92 = vector.broadcast %cst_54 : f32 to vector<4x256xf32>
    %93 = arith.select %91, %89, %92 : vector<4x256xi1>, vector<4x256xf32>
    %c0_55 = arith.constant 0 : index
    %c16_56 = arith.constant 16 : index
    %94 = vector.load %arg13[%c0_55, %c16_56] : memref<4x290xf32, #tpu.memory_space<vmem>>, vector<4x256xf32>
    %cst_57 = arith.constant 0.000000e+00 : f32
    %95 = vector.shape_cast %18 : vector<1x256xi1> to vector<1x256xi1>
    %96 = vector.broadcast %95 : vector<1x256xi1> to vector<4x256xi1>
    %97 = vector.broadcast %cst_57 : f32 to vector<4x256xf32>
    %98 = arith.select %96, %94, %97 : vector<4x256xi1>, vector<4x256xf32>
    %c0_58 = arith.constant 0 : index
    %c17_59 = arith.constant 17 : index
    %99 = vector.load %arg13[%c0_58, %c17_59] : memref<4x290xf32, #tpu.memory_space<vmem>>, vector<4x256xf32>
    %c0_60 = arith.constant 0 : index
    %c18_61 = arith.constant 18 : index
    %100 = vector.load %arg13[%c0_60, %c18_61] : memref<4x290xf32, #tpu.memory_space<vmem>>, vector<4x256xf32>
    %cst_62 = arith.constant 0.000000e+00 : f32
    %101 = vector.shape_cast %20 : vector<1x256xi1> to vector<1x256xi1>
    %102 = vector.broadcast %101 : vector<1x256xi1> to vector<4x256xi1>
    %103 = vector.broadcast %cst_62 : f32 to vector<4x256xf32>
    %104 = arith.select %102, %100, %103 : vector<4x256xi1>, vector<4x256xf32>
    %c0_63 = arith.constant 0 : index
    %c32_64 = arith.constant 32 : index
    %105 = vector.load %arg13[%c0_63, %c32_64] : memref<4x290xf32, #tpu.memory_space<vmem>>, vector<4x256xf32>
    %cst_65 = arith.constant 0.000000e+00 : f32
    %106 = vector.shape_cast %18 : vector<1x256xi1> to vector<1x256xi1>
    %107 = vector.broadcast %106 : vector<1x256xi1> to vector<4x256xi1>
    %108 = vector.broadcast %cst_65 : f32 to vector<4x256xf32>
    %109 = arith.select %107, %105, %108 : vector<4x256xi1>, vector<4x256xf32>
    %c0_66 = arith.constant 0 : index
    %c33_67 = arith.constant 33 : index
    %110 = vector.load %arg13[%c0_66, %c33_67] : memref<4x290xf32, #tpu.memory_space<vmem>>, vector<4x256xf32>
    %c0_68 = arith.constant 0 : index
    %c34_69 = arith.constant 34 : index
    %111 = vector.load %arg13[%c0_68, %c34_69] : memref<4x290xf32, #tpu.memory_space<vmem>>, vector<4x256xf32>
    %cst_70 = arith.constant 0.000000e+00 : f32
    %112 = vector.shape_cast %20 : vector<1x256xi1> to vector<1x256xi1>
    %113 = vector.broadcast %112 : vector<1x256xi1> to vector<4x256xi1>
    %114 = vector.broadcast %cst_70 : f32 to vector<4x256xf32>
    %115 = arith.select %113, %111, %114 : vector<4x256xi1>, vector<4x256xf32>
    %116 = tpu.concatenate %87, %88, %93, %98, %99, %104, %109, %110, %115 in 0 : vector<4x256xf32>, vector<4x256xf32>, vector<4x256xf32>, vector<4x256xf32>, vector<4x256xf32>, vector<4x256xf32>, vector<4x256xf32>, vector<4x256xf32>, vector<4x256xf32> -> vector<36x256xf32>
    %c0_71 = arith.constant 0 : index
    %c0_72 = arith.constant 0 : index
    %117 = vector.load %arg8[%c0_71, %c0_72] : memref<4x36xf32, #tpu.memory_space<vmem>>, vector<4x36xf32>
    %cst_73 = arith.constant dense<0.000000e+00> : vector<4x256xf32>
    %118 = tpu.matmul %117, %116, %cst_73 {dimension_numbers = #tpu.dot_dimension_numbers<[1], [0], [0], [1], [0, 0, 1, 1], [], []>} : vector<4x36xf32>, vector<36x256xf32>, vector<4x256xf32> -> vector<4x256xf32>
    %c0_74 = arith.constant 0 : index
    %c0_75 = arith.constant 0 : index
    %119 = vector.load %arg9[%c0_74, %c0_75] : memref<4x1xf32, #tpu.memory_space<vmem>>, vector<4x1xf32>
    %120 = vector.broadcast %119 : vector<4x1xf32> to vector<4x256xf32>
    %121 = arith.mulf %118, %120 : vector<4x256xf32>
    %c0_76 = arith.constant 0 : index
    %c0_77 = arith.constant 0 : index
    %122 = vector.load %arg10[%c0_76, %c0_77] : memref<4x1xf32, #tpu.memory_space<vmem>>, vector<4x1xf32>
    %123 = vector.broadcast %122 : vector<4x1xf32> to vector<4x256xf32>
    %124 = arith.addf %121, %123 : vector<4x256xf32>
    %cst_78 = arith.constant 0.000000e+00 : f32
    %125 = vector.broadcast %cst_78 : f32 to vector<4x256xf32>
    %126 = arith.maximumf %124, %125 : vector<4x256xf32>
    %127 = tpu.concatenate %32, %79, %126 in 0 : vector<8x256xf32>, vector<4x256xf32>, vector<4x256xf32> -> vector<16x256xf32>
    %128 = vector.shape_cast %127 : vector<16x256xf32> to vector<1x16x256xf32>
    %c0_79 = arith.constant 0 : index
    %c0_80 = arith.constant 0 : index
    %c0_81 = arith.constant 0 : index
    %129 = vector.load %arg11[%c0_79, %c0_80, %c0_81] : memref<1x16x256xf32, #tpu.memory_space<vmem>>, vector<1x16x256xf32>
    tpu.vector_store %arg11[%c0_79, %c0_80, %c0_81], %128 {strides = array<i32>} : memref<1x16x256xf32, #tpu.memory_space<vmem>>, vector<1x16x256xf32>,
    return
  }
  func.func @transform_0(%arg0: i32) -> (i32, i32, i32) {
    %c0_i32 = arith.constant 0 : i32
    %c0_i32_0 = arith.constant 0 : i32
    %c0_i32_1 = arith.constant 0 : i32
    return %arg0, %c0_i32, %c0_i32_0 : i32, i32, i32
  }
  func.func @transform_1(%arg0: i32) -> (i32, i32) {
    %c0_i32 = arith.constant 0 : i32
    %c0_i32_0 = arith.constant 0 : i32
    %c0_i32_1 = arith.constant 0 : i32
    return %c0_i32, %c0_i32_0 : i32, i32
  }
  func.func @transform_2(%arg0: i32) -> (i32, i32) {
    %c0_i32 = arith.constant 0 : i32
    %c0_i32_0 = arith.constant 0 : i32
    %c0_i32_1 = arith.constant 0 : i32
    return %c0_i32, %c0_i32_0 : i32, i32
  }
  func.func @transform_3(%arg0: i32) -> (i32, i32) {
    %c0_i32 = arith.constant 0 : i32
    %c0_i32_0 = arith.constant 0 : i32
    %c0_i32_1 = arith.constant 0 : i32
    return %c0_i32, %c0_i32_0 : i32, i32
  }
  func.func @transform_4(%arg0: i32) -> (i32, i32) {
    %c0_i32 = arith.constant 0 : i32
    %c0_i32_0 = arith.constant 0 : i32
    %c0_i32_1 = arith.constant 0 : i32
    return %c0_i32, %c0_i32_0 : i32, i32
  }
  func.func @transform_5(%arg0: i32) -> (i32, i32) {
    %c0_i32 = arith.constant 0 : i32
    %c0_i32_0 = arith.constant 0 : i32
    %c0_i32_1 = arith.constant 0 : i32
    return %c0_i32, %c0_i32_0 : i32, i32
  }
  func.func @transform_6(%arg0: i32) -> (i32, i32) {
    %c0_i32 = arith.constant 0 : i32
    %c0_i32_0 = arith.constant 0 : i32
    %c0_i32_1 = arith.constant 0 : i32
    return %c0_i32, %c0_i32_0 : i32, i32
  }
  func.func @transform_7(%arg0: i32) -> (i32, i32) {
    %c0_i32 = arith.constant 0 : i32
    %c0_i32_0 = arith.constant 0 : i32
    %c0_i32_1 = arith.constant 0 : i32
    return %c0_i32, %c0_i32_0 : i32, i32
  }
  func.func @transform_8(%arg0: i32) -> (i32, i32) {
    %c0_i32 = arith.constant 0 : i32
    %c0_i32_0 = arith.constant 0 : i32
    %c0_i32_1 = arith.constant 0 : i32
    return %c0_i32, %c0_i32_0 : i32, i32
  }
  func.func @transform_9(%arg0: i32) -> (i32, i32) {
    %c0_i32 = arith.constant 0 : i32
    %c0_i32_0 = arith.constant 0 : i32
    %c0_i32_1 = arith.constant 0 : i32
    return %c0_i32, %c0_i32_0 : i32, i32
  }
  func.func @transform_10(%arg0: i32) -> (i32, i32, i32) {
    %c0_i32 = arith.constant 0 : i32
    %c0_i32_0 = arith.constant 0 : i32
    %c0_i32_1 = arith.constant 0 : i32
    return %arg0, %c0_i32, %c0_i32_0 : i32, i32, i32
  }
}

</mosaic_0001>

<llo_original>
// kernel: cat_bottleneck_forward.1
$region0: #{cat_bottleneck_forward.1}
  #allocation0 [shape = 'u32[]', space=smem, size = 0x4, offset = 0x4, fixed_abs, tag = 'smem constant byte address 0x4 - core index']
  #allocation1 [shape = 'u32[72,128]{1,0:T(1,128)}', space=vmem, size = 0x9000, scoped, tag = 'internal scratch']
  #allocation2 [shape = 'f32[8,290]{1,0:T(8,128)}', space=vmem, size = 0x3000, scoped, tag = 'scratch operand']
  #allocation3 [shape = 'f32[4,290]{1,0:T(4,128)}', space=vmem, size = 0x1800, scoped, tag = 'scratch operand']
  %s0 = inlined_call_operand.vmem [shape: f32[2,4,256], index: 0, kind: input, shape index: {}]
  %s1 = inlined_call_operand.vmem [shape: f32[8,4], index: 1, kind: input, shape index: {}]
  %s2 = inlined_call_operand.vmem [shape: f32[8,1], index: 2, kind: input, shape index: {}]
  %s3 = inlined_call_operand.vmem [shape: f32[8,1], index: 3, kind: input, shape index: {}]
  %s4 = inlined_call_operand.vmem [shape: f32[4,72], index: 4, kind: input, shape index: {}]
  %s5 = inlined_call_operand.vmem [shape: f32[4,1], index: 5, kind: input, shape index: {}]
  %s6 = inlined_call_operand.vmem [shape: f32[4,1], index: 6, kind: input, shape index: {}]
  %s7 = inlined_call_operand.vmem [shape: f32[4,36], index: 7, kind: input, shape index: {}]
  %s8 = inlined_call_operand.vmem [shape: f32[4,1], index: 8, kind: input, shape index: {}]
  %s9 = inlined_call_operand.vmem [shape: f32[4,1], index: 9, kind: input, shape index: {}]
  %s10 = inlined_call_operand.vmem [shape: f32[2,16,256], index: 10, kind: output, shape index: {}]
  %s11 = sld [smem:[#allocation0]]
  $region73: #{cat_bottleneck_forward.1} parent=0
    _
  %s13 = ssub.s32 1, %s11
  %s14 = scalar_select 0, %s13, %s11
  loop: start=0, step=1, limit=4
  $region2: #{cat_bottleneck_forward.1} parent=0 // loop_pre_header
    _
  $region3: #{cat_bottleneck_forward.1} parent=0 // loop_header
    %s16 = sphi 0, %s20
    %p17 = scmp.ge.s32.totalorder %s16, 4
    %s26 = sphi 0, %s28
    %s29 = sphi 0, %s26
    %s30 = sphi 0, %s29
    %s46 = sphi 0, %s30
    %s50 = sphi 0, %s50
    %s52 = sphi 0, %s50
    %s53 = sphi 0, %s52
    %s67 = sphi 0, %s53
    %s71 = sphi 0, %s71
    %s73 = sphi 0, %s71
    %s74 = sphi 0, %s73
    %s88 = sphi 0, %s74
    %s92 = sphi 0, %s92
    %s94 = sphi 0, %s92
    %s95 = sphi 0, %s94
    %s109 = sphi 0, %s95
    %s113 = sphi 0, %s113
    %s115 = sphi 0, %s113
    %s116 = sphi 0, %s115
    %s130 = sphi 0, %s116
    %s134 = sphi 0, %s134
    %s136 = sphi 0, %s134
    %s137 = sphi 0, %s136
    %s151 = sphi 0, %s137
    %s155 = sphi 0, %s155
    %s157 = sphi 0, %s155
    %s158 = sphi 0, %s157
    %s172 = sphi 0, %s158
    %s176 = sphi 0, %s176
    %s178 = sphi 0, %s176
    %s179 = sphi 0, %s178
    %s193 = sphi 0, %s179
    %s197 = sphi 0, %s197
    %s199 = sphi 0, %s197
    %s200 = sphi 0, %s199
    %s214 = sphi 0, %s200
    %s218 = sphi 0, %s218
    %s220 = sphi 0, %s218
    %s221 = sphi 0, %s220
    %s235 = sphi 0, %s221
    %s241 = sphi 0, %s243
    %s244 = sphi 0, %s241
    %s245 = sphi 0, %s244
    %s261 = sphi 0, %s245
  $region4: #{cat_bottleneck_forward.1} parent=0 // loop_header_branch
    %19 = sbr.rel (%p17) target = $region8
  $region5: #{cat_bottleneck_forward.1} parent=0 // loop_body
    %s21 = ssub.s32 %s16, 1
    %s22 = ssub.s32 %s16, 2
    %s23 = sadd.s32 %s16, 1
    %s24 = ssub.s32 %s16, %s23
    %p25 = scmp.eq.s32.totalorder %s24, 0
    %s27 = sadd.s32 %s26, 1
    %s28 = scalar_select %p25, %s26, %s27
    %p31 = pneg %p25
    %p32 = scmp.eq.s32.totalorder %s16, 1
    %p33 = por %p31, %p32
    %p34 = scmp.ne.s32.totalorder %s26, %s29
    %p35 = scmp.eq.s32.totalorder %s16, 0
    %p36 = por %p34, %p35
    %p37 = scmp.ne.s32.totalorder %s26, %s29
    %p38 = scmp.eq.s32.totalorder %s21, 1
    %p39 = por %p37, %p38
    %p40 = scmp.ne.s32.totalorder %s29, %s30
    %p41 = scmp.eq.s32.totalorder %s21, 0
    %p42 = por %p40, %p41
    %p43 = scmp.ne.s32.totalorder %s29, %s30
    %p44 = scmp.eq.s32.totalorder %s22, 1
    %p45 = por %p43, %p44
    %p47 = scmp.ne.s32.totalorder %s30, %s46
    %p48 = scmp.eq.s32.totalorder %s22, 0
    %p49 = por %p47, %p48
    %s51 = sadd.s32 %s50, 1
    %p54 = scmp.eq.s32.totalorder %s16, 1
    %p55 = scmp.ne.s32.totalorder %s50, %s52
    %p56 = scmp.eq.s32.totalorder %s16, 0
    %p57 = por %p55, %p56
    %p58 = scmp.ne.s32.totalorder %s50, %s52
    %p59 = scmp.eq.s32.totalorder %s21, 1
    %p60 = por %p58, %p59
    %p61 = scmp.ne.s32.totalorder %s52, %s53
    %p62 = scmp.eq.s32.totalorder %s21, 0
    %p63 = por %p61, %p62
    %p64 = scmp.ne.s32.totalorder %s52, %s53
    %p65 = scmp.eq.s32.totalorder %s22, 1
    %p66 = por %p64, %p65
    %p68 = scmp.ne.s32.totalorder %s53, %s67
    %p69 = scmp.eq.s32.totalorder %s22, 0
    %p70 = por %p68, %p69
    %s72 = sadd.s32 %s71, 1
    %p75 = scmp.eq.s32.totalorder %s16, 1
    %p76 = scmp.ne.s32.totalorder %s71, %s73
    %p77 = scmp.eq.s32.totalorder %s16, 0
    %p78 = por %p76, %p77
    %p79 = scmp.ne.s32.totalorder %s71, %s73
    %p80 = scmp.eq.s32.totalorder %s21, 1
    %p81 = por %p79, %p80
    %p82 = scmp.ne.s32.totalorder %s73, %s74
    %p83 = scmp.eq.s32.totalorder %s21, 0
    %p84 = por %p82, %p83
    %p85 = scmp.ne.s32.totalorder %s73, %s74
    %p86 = scmp.eq.s32.totalorder %s22, 1
    %p87 = por %p85, %p86
    %p89 = scmp.ne.s32.totalorder %s74, %s88
    %p90 = scmp.eq.s32.totalorder %s22, 0
    %p91 = por %p89, %p90
    %s93 = sadd.s32 %s92, 1
    %p96 = scmp.eq.s32.totalorder %s16, 1
    %p97 = scmp.ne.s32.totalorder %s92, %s94
    %p98 = scmp.eq.s32.totalorder %s16, 0
    %p99 = por %p97, %p98
    %p100 = scmp.ne.s32.totalorder %s92, %s94
    %p101 = scmp.eq.s32.totalorder %s21, 1
    %p102 = por %p100, %p101
    %p103 = scmp.ne.s32.totalorder %s94, %s95
    %p104 = scmp.eq.s32.totalorder %s21, 0
    %p105 = por %p103, %p104
    %p106 = scmp.ne.s32.totalorder %s94, %s95
    %p107 = scmp.eq.s32.totalorder %s22, 1
    %p108 = por %p106, %p107
    %p110 = scmp.ne.s32.totalorder %s95, %s109
    %p111 = scmp.eq.s32.totalorder %s22, 0
    %p112 = por %p110, %p111
    %s114 = sadd.s32 %s113, 1
    %p117 = scmp.eq.s32.totalorder %s16, 1
    %p118 = scmp.ne.s32.totalorder %s113, %s115
    %p119 = scmp.eq.s32.totalorder %s16, 0
    %p120 = por %p118, %p119
    %p121 = scmp.ne.s32.totalorder %s113, %s115
    %p122 = scmp.eq.s32.totalorder %s21, 1
    %p123 = por %p121, %p122
    %p124 = scmp.ne.s32.totalorder %s115, %s116
    %p125 = scmp.eq.s32.totalorder %s21, 0
    %p126 = por %p124, %p125
    %p127 = scmp.ne.s32.totalorder %s115, %s116
    %p128 = scmp.eq.s32.totalorder %s22, 1
    %p129 = por %p127, %p128
    %p131 = scmp.ne.s32.totalorder %s116, %s130
    %p132 = scmp.eq.s32.totalorder %s22, 0
    %p133 = por %p131, %p132
    %s135 = sadd.s32 %s134, 1
    %p138 = scmp.eq.s32.totalorder %s16, 1
    %p139 = scmp.ne.s32.totalorder %s134, %s136
    %p140 = scmp.eq.s32.totalorder %s16, 0
    %p141 = por %p139, %p140
    %p142 = scmp.ne.s32.totalorder %s134, %s136
    %p143 = scmp.eq.s32.totalorder %s21, 1
    %p144 = por %p142, %p143
    %p145 = scmp.ne.s32.totalorder %s136, %s137
    %p146 = scmp.eq.s32.totalorder %s21, 0
    %p147 = por %p145, %p146
    %p148 = scmp.ne.s32.totalorder %s136, %s137
    %p149 = scmp.eq.s32.totalorder %s22, 1
    %p150 = por %p148, %p149
    %p152 = scmp.ne.s32.totalorder %s137, %s151
    %p153 = scmp.eq.s32.totalorder %s22, 0
    %p154 = por %p152, %p153
    %s156 = sadd.s32 %s155, 1
    %p159 = scmp.eq.s32.totalorder %s16, 1
    %p160 = scmp.ne.s32.totalorder %s155, %s157
    %p161 = scmp.eq.s32.totalorder %s16, 0
    %p162 = por %p160, %p161
    %p163 = scmp.ne.s32.totalorder %s155, %s157
    %p164 = scmp.eq.s32.totalorder %s21, 1
    %p165 = por %p163, %p164
    %p166 = scmp.ne.s32.totalorder %s157, %s158
    %p167 = scmp.eq.s32.totalorder %s21, 0
    %p168 = por %p166, %p167
    %p169 = scmp.ne.s32.totalorder %s157, %s158
    %p170 = scmp.eq.s32.totalorder %s22, 1
    %p171 = por %p169, %p170
    %p173 = scmp.ne.s32.totalorder %s158, %s172
    %p174 = scmp.eq.s32.totalorder %s22, 0
    %p175 = por %p173, %p174
    %s177 = sadd.s32 %s176, 1
    %p180 = scmp.eq.s32.totalorder %s16, 1
    %p181 = scmp.ne.s32.totalorder %s176, %s178
    %p182 = scmp.eq.s32.totalorder %s16, 0
    %p183 = por %p181, %p182
    %p184 = scmp.ne.s32.totalorder %s176, %s178
    %p185 = scmp.eq.s32.totalorder %s21, 1
    %p186 = por %p184, %p185
    %p187 = scmp.ne.s32.totalorder %s178, %s179
    %p188 = scmp.eq.s32.totalorder %s21, 0
    %p189 = por %p187, %p188
    %p190 = scmp.ne.s32.totalorder %s178, %s179
    %p191 = scmp.eq.s32.totalorder %s22, 1
    %p192 = por %p190, %p191
    %p194 = scmp.ne.s32.totalorder %s179, %s193
    %p195 = scmp.eq.s32.totalorder %s22, 0
    %p196 = por %p194, %p195
    %s198 = sadd.s32 %s197, 1
    %p201 = scmp.eq.s32.totalorder %s16, 1
    %p202 = scmp.ne.s32.totalorder %s197, %s199
    %p203 = scmp.eq.s32.totalorder %s16, 0
    %p204 = por %p202, %p203
    %p205 = scmp.ne.s32.totalorder %s197, %s199
    %p206 = scmp.eq.s32.totalorder %s21, 1
    %p207 = por %p205, %p206
    %p208 = scmp.ne.s32.totalorder %s199, %s200
    %p209 = scmp.eq.s32.totalorder %s21, 0
    %p210 = por %p208, %p209
    %p211 = scmp.ne.s32.totalorder %s199, %s200
    %p212 = scmp.eq.s32.totalorder %s22, 1
    %p213 = por %p211, %p212
    %p215 = scmp.ne.s32.totalorder %s200, %s214
    %p216 = scmp.eq.s32.totalorder %s22, 0
    %p217 = por %p215, %p216
    %s219 = sadd.s32 %s218, 1
    %p222 = scmp.eq.s32.totalorder %s16, 1
    %p223 = scmp.ne.s32.totalorder %s218, %s220
    %p224 = scmp.eq.s32.totalorder %s16, 0
    %p225 = por %p223, %p224
    %p226 = scmp.ne.s32.totalorder %s218, %s220
    %p227 = scmp.eq.s32.totalorder %s21, 1
    %p228 = por %p226, %p227
    %p229 = scmp.ne.s32.totalorder %s220, %s221
    %p230 = scmp.eq.s32.totalorder %s21, 0
    %p231 = por %p229, %p230
    %p232 = scmp.ne.s32.totalorder %s220, %s221
    %p233 = scmp.eq.s32.totalorder %s22, 1
    %p234 = por %p232, %p233
    %p236 = scmp.ne.s32.totalorder %s221, %s235
    %p237 = scmp.eq.s32.totalorder %s22, 0
    %p238 = por %p236, %p237
    %s239 = ssub.s32 %s16, %s23
    %p240 = scmp.eq.s32.totalorder %s239, 0
    %s242 = sadd.s32 %s241, 1
    %s243 = scalar_select %p240, %s241, %s242
    %p246 = pneg %p240
    %p247 = scmp.eq.s32.totalorder %s16, 1
    %p248 = por %p246, %p247
    %p249 = scmp.ne.s32.totalorder %s241, %s244
    %p250 = scmp.eq.s32.totalorder %s16, 0
    %p251 = por %p249, %p250
    %p252 = scmp.ne.s32.totalorder %s241, %s244
    %p253 = scmp.eq.s32.totalorder %s21, 1
    %p254 = por %p252, %p253
    %p255 = scmp.ne.s32.totalorder %s244, %s245
    %p256 = scmp.eq.s32.totalorder %s21, 0
    %p257 = por %p255, %p256
    %p258 = scmp.ne.s32.totalorder %s244, %s245
    %p259 = scmp.eq.s32.totalorder %s22, 1
    %p260 = por %p258, %p259
    %p262 = scmp.ne.s32.totalorder %s245, %s261
    %p263 = scmp.eq.s32.totalorder %s22, 0
    %p264 = por %p262, %p263
    %p265 = scmp.le.s32.totalorder 1, %s16
    %p266 = scmp.lt.s32.totalorder %s16, 3
    %p267 = pnand %p265, %p266
    %p268 = pneg %p267
    // Predicated region
    $region9: #{cat_bottleneck_forward.1} parent=5 // pred_check
      _
    $region10: #{cat_bottleneck_forward.1} parent=5 // pred_check_branch
      %270 = sbr.rel (%p267) target = $region12
    $region11: #{cat_bottleneck_forward.1} parent=5 // pred_region
      %s271 = ssub.s32 %s16, 1
      // Predicated region
      $region13: #{cat_bottleneck_forward.1} parent=11 // pred_check
        %p272 = pneg %p63
      $region14: #{cat_bottleneck_forward.1} parent=11 // pred_check_branch
        %274 = sbr.rel (%p272) target = $region16
      $region15: #{cat_bottleneck_forward.1} parent=11 // pred_region
        _
      $region16: #{cat_bottleneck_forward.1} parent=11 // pred_fallthru
        _
      // Predicated region
      $region17: #{cat_bottleneck_forward.1} parent=11 // pred_check
        %p275 = pneg %p84
      $region18: #{cat_bottleneck_forward.1} parent=11 // pred_check_branch
        %277 = sbr.rel (%p275) target = $region20
      $region19: #{cat_bottleneck_forward.1} parent=11 // pred_region
        _
      $region20: #{cat_bottleneck_forward.1} parent=11 // pred_fallthru
        _
      // Predicated region
      $region21: #{cat_bottleneck_forward.1} parent=11 // pred_check
        %p278 = pneg %p105
      $region22: #{cat_bottleneck_forward.1} parent=11 // pred_check_branch
        %280 = sbr.rel (%p278) target = $region24
      $region23: #{cat_bottleneck_forward.1} parent=11 // pred_region
        _
      $region24: #{cat_bottleneck_forward.1} parent=11 // pred_fallthru
        _
      // Predicated region
      $region25: #{cat_bottleneck_forward.1} parent=11 // pred_check
        %p281 = pneg %p126
      $region26: #{cat_bottleneck_forward.1} parent=11 // pred_check_branch
        %283 = sbr.rel (%p281) target = $region28
      $region27: #{cat_bottleneck_forward.1} parent=11 // pred_region
        _
      $region28: #{cat_bottleneck_forward.1} parent=11 // pred_fallthru
        _
      // Predicated region
      $region29: #{cat_bottleneck_forward.1} parent=11 // pred_check
        %p284 = pneg %p147
      $region30: #{cat_bottleneck_forward.1} parent=11 // pred_check_branch
        %286 = sbr.rel (%p284) target = $region32
      $region31: #{cat_bottleneck_forward.1} parent=11 // pred_region
        _
      $region32: #{cat_bottleneck_forward.1} parent=11 // pred_fallthru
        _
      // Predicated region
      $region33: #{cat_bottleneck_forward.1} parent=11 // pred_check
        %p287 = pneg %p168
      $region34: #{cat_bottleneck_forward.1} parent=11 // pred_check_branch
        %289 = sbr.rel (%p287) target = $region36
      $region35: #{cat_bottleneck_forward.1} parent=11 // pred_region
        _
      $region36: #{cat_bottleneck_forward.1} parent=11 // pred_fallthru
        _
      // Predicated region
      $region37: #{cat_bottleneck_forward.1} parent=11 // pred_check
        %p290 = pneg %p189
      $region38: #{cat_bottleneck_forward.1} parent=11 // pred_check_branch
        %292 = sbr.rel (%p290) target = $region40
      $region39: #{cat_bottleneck_forward.1} parent=11 // pred_region
        _
      $region40: #{cat_bottleneck_forward.1} parent=11 // pred_fallthru
        _
      // Predicated region
      $region41: #{cat_bottleneck_forward.1} parent=11 // pred_check
        %p293 = pneg %p210
      $region42: #{cat_bottleneck_forward.1} parent=11 // pred_check_branch
        %295 = sbr.rel (%p293) target = $region44
      $region43: #{cat_bottleneck_forward.1} parent=11 // pred_region
        _
      $region44: #{cat_bottleneck_forward.1} parent=11 // pred_fallthru
        _
      // Predicated region
      $region45: #{cat_bottleneck_forward.1} parent=11 // pred_check
        %p296 = pneg %p231
      $region46: #{cat_bottleneck_forward.1} parent=11 // pred_check_branch
        %298 = sbr.rel (%p296) target = $region48
      $region47: #{cat_bottleneck_forward.1} parent=11 // pred_region
        _
      $region48: #{cat_bottleneck_forward.1} parent=11 // pred_fallthru
        _
    $region12: #{cat_bottleneck_forward.1} parent=5 // pred_fallthru
      _
    %p299 = scmp.lt.s32.totalorder %s16, 2
    // Predicated region
    $region49: #{cat_bottleneck_forward.1} parent=5 // pred_check
      %p300 = pneg %p299
    $region50: #{cat_bottleneck_forward.1} parent=5 // pred_check_branch
      %302 = sbr.rel (%p300) target = $region52
    $region51: #{cat_bottleneck_forward.1} parent=5 // pred_region
      // Predicated region
      $region53: #{cat_bottleneck_forward.1} parent=51 // pred_check
        %p303 = pneg %p36
      $region54: #{cat_bottleneck_forward.1} parent=51 // pred_check_branch
        %305 = sbr.rel (%p303) target = $region56
      $region55: #{cat_bottleneck_forward.1} parent=51 // pred_region
        %p306 = scmp.lt.s32.totalorder %s16, 1
        %s307 = scalar_select %p306, %s16, 1
        %s308 = smul.addr %s307, 2
        %s309 = smul.addr %s308, 4
        %s310 = scalar_lea.vmem %s0, %s309
      $region56: #{cat_bottleneck_forward.1} parent=51 // pred_fallthru
        _
    $region52: #{cat_bottleneck_forward.1} parent=5 // pred_fallthru
      _
    %p311 = scmp.le.s32.totalorder 1, %s16
    %p312 = scmp.lt.s32.totalorder %s16, 3
    %p313 = pnand %p311, %p312
    %p314 = pneg %p313
    // Predicated region
    $region57: #{cat_bottleneck_forward.1} parent=5 // pred_check
      _
    $region58: #{cat_bottleneck_forward.1} parent=5 // pred_check_branch
      %316 = sbr.rel (%p313) target = $region60
    $region59: #{cat_bottleneck_forward.1} parent=5 // pred_region
      %s317 = ssub.s32 %s16, 1
      %p318 = scmp.lt.s32.totalorder %s21, 1
      %s319 = scalar_select %p318, %s21, 1
      %s320 = smul.addr %s319, 2
      %s321 = smul.addr %s320, 4
      %s322 = scalar_lea.vmem %s0, %s321
      %p323 = pneg %p42
      %p324 = pneg %p39
      %p325 = pneg %p63
      %p326 = pneg %p60
      %p327 = pneg %p84
      %p328 = pneg %p81
      %p329 = pneg %p105
      %p330 = pneg %p102
      %p331 = pneg %p126
      %p332 = pneg %p123
      %p333 = pneg %p147
      %p334 = pneg %p144
      %p335 = pneg %p168
      %p336 = pneg %p165
      %p337 = pneg %p189
      %p338 = pneg %p186
      %p339 = pneg %p210
      %p340 = pneg %p207
      %p341 = pneg %p231
      %p342 = pneg %p228
      %p343 = pneg %p257
      %p344 = pneg %p254
      %p345 = scmp.lt.s32.totalorder %s21, 1
      %s346 = scalar_select %p345, %s21, 1
      %s347 = smul.addr %s346, 4
      %s348 = smul.addr %s347, 8
      %s349 = scalar_lea.vmem %s10, %s348
      %p350 = scmp.lt.s32.totalorder %s21, 1
      %s351 = scalar_select %p350, %s21, 1
      %s352 = smul.addr %s351, 2
      %s353 = smul.addr %s352, 4
      %s354 = scalar_lea.vmem %s0, %s353
      %p355 = scmp.lt.s32.totalorder %s21, 1
      %s356 = scalar_select %p355, %s21, 1
      %s357 = smul.addr %s356, 4
      %s358 = smul.addr %s357, 8
      %s359 = scalar_lea.vmem %s10, %s358
      %v360 = vlaneseq
      %v361 = vand.u32 %v360, 127
      %v362 = vadd.s32 %v361, 128
      %vm363 = vcmp.lt.s32.totalorder %v361, 0
      %v364 = vsub.s32 0, %v361
      %v365 = vsel %vm363, %v364, %v361
      %v366 = vshrl.u32 %v365, 4
      %v367 = vand.u32 %v365, 15
      %v368 = vsub.s32 0, %v367
      %v369 = vsel %vm363, %v368, %v367
      %vm370 = vcmp.lt.s32.totalorder %v362, 0
      %v371 = vsub.s32 0, %v362
      %v372 = vsel %vm370, %v371, %v362
      %v373 = vshrl.u32 %v372, 4
      %v374 = vand.u32 %v372, 15
      %v375 = vsub.s32 0, %v374
      %v376 = vsel %vm370, %v375, %v374
      %vm377 = vcmp.ne.s32.totalorder %v369, 0
      %vm378 = vcmp.ne.s32.totalorder %v376, 0
      %vm379 = vcmp.lt.s32.totalorder %v369, 0
      %vm380 = vcmp.lt.s32.totalorder %v376, 0
      %vm381 = vmand %vm379, %vm377
      %vm382 = vmand %vm380, %vm378
      %v383 = vadd.s32 %v369, 16
      %v384 = vadd.s32 %v376, 16
      %v385 = vsel %vm381, %v383, %v369
      %v386 = vsel %vm382, %v384, %v376
      %vm387 = vcmp.ne.s32.totalorder %v385, 0
      %vm388 = vcmp.ne.s32.totalorder %v386, 0
      %vm389 = vcmp.ne.s32.totalorder %v385, 15
      %vm390 = vcmp.ne.s32.totalorder %v386, 15
      %v391 = vld [vmem:[%s354] sm:$0xff]
      %v392 = vld [vmem:[%s1] sm:$0xff]
      %394 = vst [vmem:[#allocation1] ss:$2 sm:$0xff] %v391
      %v395 = vld.sshfl [vmem:[#allocation1] sm:$0xff pattern:$0x75316420]
      %v396 = vld.sshfl [vmem:[#allocation1 + $0x8] sm:$0xff pattern:$0x75316420]
      %vm397 = vcmask 31744
      %v399 = vsel %vm397, %v392, 0
      %vm401 = vcmask 1043456
      %v402 = vsel %vm401, %v395, 0
      %v404 = vsel %vm401, %v396, 0
      %406 = vmatpush.msra.mxu0 0.0
      %407 = vmatpush.msra.mxu0 0.0
      %408 = vmatpush.msra.mxu0 0.0
      %409 = vmatpush.msra.mxu0 0.0
      %410 = vmatpush.msra.mxu0 0.0
      %411 = vmatpush.msra.mxu0 0.0
      %412 = vmatpush.msra.mxu0 0.0
      %413 = vmatpush.msra.mxu0 0.0
      %414 = vmatpush.msra.mxu0 0.0
      %415 = vmatpush.msra.mxu0 0.0
      %416 = vmatpush.msra.mxu0 0.0
      %417 = vmatpush.msra.mxu0 0.0
      %418 = vmatpush.msra.mxu0 0.0
      %419 = vmatpush.msra.mxu0 0.0
      %420 = vmatpush.msra.mxu0 0.0
      %421 = vmatpush.msra.mxu0 %v402
      %422 = vmatmul.f32.gmra.mxu0 %v399
      %v423 = vpop.f32.mrf.mxu0
      %v424 = vadd.f32 0.0, %v423
      %425 = vdwg.mxu0
      %426 = vmatpush.msra.mxu0 0.0
      %427 = vmatpush.msra.mxu0 0.0
      %428 = vmatpush.msra.mxu0 0.0
      %429 = vmatpush.msra.mxu0 0.0
      %430 = vmatpush.msra.mxu0 0.0
      %431 = vmatpush.msra.mxu0 0.0
      %432 = vmatpush.msra.mxu0 0.0
      %433 = vmatpush.msra.mxu0 0.0
      %434 = vmatpush.msra.mxu0 0.0
      %435 = vmatpush.msra.mxu0 0.0
      %436 = vmatpush.msra.mxu0 0.0
      %437 = vmatpush.msra.mxu0 0.0
      %438 = vmatpush.msra.mxu0 0.0
      %439 = vmatpush.msra.mxu0 0.0
      %440 = vmatpush.msra.mxu0 0.0
      %441 = vmatpush.msra.mxu0 %v404
      %442 = vmatmul.f32.gmra.mxu0 %v399
      %v443 = vpop.f32.mrf.mxu0
      %v444 = vadd.f32 0.0, %v443
      %445 = vdwg.mxu0
      %v446 = vld [vmem:[%s2] sm:$0xff]
      %448 = vset.pattern.permute.xlu0 0
      %449 = vperm.xlu0 %448, %v446
      %v450 = vpop.permute.xlu0 %449
      %v452 = vmul.f32 %v424, %v450
      %v453 = vmul.f32 %v444, %v450
      %v454 = vld [vmem:[%s3] sm:$0xff]
      %456 = vset.pattern.permute.xlu0 0
      %457 = vperm.xlu0 %456, %v454
      %v458 = vpop.permute.xlu0 %457
      %v460 = vadd.f32 %v452, %v458
      %v461 = vadd.f32 %v453, %v458
      %v462 = vmax.f32 %v460, 0.0
      %v463 = vmax.f32 %v461, 0.0
      %464 = vst [vmem:[#allocation2] sm:$0xff] 0.0
      %465 = vst [vmem:[#allocation2 + $0x8] sm:$0xff] 0.0
      %vm466 = vcmask 277504
      %467 = vst.msk [vmem:[#allocation2 + $0x10] sm:$0xff] %vm466, 0.0
      %470 = vrot.lane.b32.xlu0 %v462, 17
      %v471 = vpop.permute.xlu0 %470
      %472 = vrot.lane.b32.xlu0 %v463, 17
      %v473 = vpop.permute.xlu0 %472
      %vm474 = vcmask 138240
      %v475 = vsel %vm474, %v471, %v473
      %vm479 = vcmask 1047688
      %480 = vst.msk [vmem:[#allocation2] sm:$0xff] %vm479, %v471
      %481 = vst [vmem:[#allocation2 + $0x8] sm:$0xff] %v475
      %482 = vst.msk [vmem:[#allocation2 + $0x10] sm:$0xff] %vm474, %v473
      %v483 = vld [vmem:[#allocation2] sm:$0xff]
      %v484 = vld [vmem:[#allocation2 + $0x8] sm:$0xff]
      %v485 = vsel %vm387, 1, 0
      %v486 = vsel %vm388, 1, 0
      %vm487 = vcmp.eq.s32.totalorder %v485, 1
      %vm488 = vcmp.eq.s32.totalorder %v486, 1
      %v489 = vsel %vm487, %v483, 0.0
      %v490 = vsel %vm488, %v484, 0.0
      %v491 = vld [vmem:[#allocation2 + $0x10] sm:$0xff]
      %v492 = vsel %vm389, 1, 0
      %v493 = vsel %vm390, 1, 0
      %vm494 = vcmp.eq.s32.totalorder %v492, 1
      %vm495 = vcmp.eq.s32.totalorder %v493, 1
      %499 = vrot.lane.b32.xlu0 %v483, 126
      %v500 = vpop.permute.xlu0 %499
      %501 = vrot.lane.b32.xlu0 %v484, 126
      %v502 = vpop.permute.xlu0 %501
      %503 = vrot.lane.b32.xlu0 %v491, 126
      %v504 = vpop.permute.xlu0 %503
      %vm505 = vcmask 1031168
      %v506 = vsel %vm505, %v500, %v502
      %v507 = vsel %vm505, %v502, %v504
      %v510 = vsel %vm494, %v506, 0.0
      %v511 = vsel %vm495, %v507, 0.0
      %512 = vrot.lane.b32.xlu0 %v483, 112
      %v513 = vpop.permute.xlu0 %512
      %514 = vrot.lane.b32.xlu0 %v484, 112
      %v515 = vpop.permute.xlu0 %514
      %516 = vrot.lane.b32.xlu0 %v491, 112
      %v517 = vpop.permute.xlu0 %516
      %vm518 = vcmask 916480
      %v519 = vsel %vm518, %v513, %v515
      %v520 = vsel %vm518, %v515, %v517
      %v523 = vsel %vm487, %v519, 0.0
      %v524 = vsel %vm488, %v520, 0.0
      %525 = vrot.lane.b32.xlu0 %v483, 110
      %v526 = vpop.permute.xlu0 %525
      %527 = vrot.lane.b32.xlu0 %v484, 110
      %v528 = vpop.permute.xlu0 %527
      %529 = vrot.lane.b32.xlu0 %v491, 110
      %v530 = vpop.permute.xlu0 %529
      %vm531 = vcmask 900096
      %v532 = vsel %vm531, %v526, %v528
      %v533 = vsel %vm531, %v528, %v530
      %v536 = vsel %vm494, %v532, 0.0
      %v537 = vsel %vm495, %v533, 0.0
      %538 = vrot.lane.b32.xlu0 %v483, 96
      %v539 = vpop.permute.xlu0 %538
      %540 = vrot.lane.b32.xlu0 %v484, 96
      %v541 = vpop.permute.xlu0 %540
      %542 = vrot.lane.b32.xlu0 %v491, 96
      %v543 = vpop.permute.xlu0 %542
      %vm544 = vcmask 785408
      %v545 = vsel %vm544, %v539, %v541
      %v546 = vsel %vm544, %v541, %v543
      %v549 = vsel %vm487, %v545, 0.0
      %v550 = vsel %vm488, %v546, 0.0
      %551 = vrot.lane.b32.xlu0 %v483, 94
      %v552 = vpop.permute.xlu0 %551
      %553 = vrot.lane.b32.xlu0 %v484, 94
      %v554 = vpop.permute.xlu0 %553
      %555 = vrot.lane.b32.xlu0 %v491, 94
      %v556 = vpop.permute.xlu0 %555
      %vm557 = vcmask 769024
      %v558 = vsel %vm557, %v552, %v554
      %v559 = vsel %vm557, %v554, %v556
      %v562 = vsel %vm494, %v558, 0.0
      %v563 = vsel %vm495, %v559, 0.0
      %564 = vrot.lane.b32.xlu0 %v483, 127
      %v565 = vpop.permute.xlu0 %564
      %566 = vrot.lane.b32.xlu0 %v484, 127
      %v567 = vpop.permute.xlu0 %566
      %568 = vrot.lane.b32.xlu0 %v491, 127
      %v569 = vpop.permute.xlu0 %568
      %vm570 = vcmask 1039360
      %v571 = vsel %vm570, %v565, %v567
      %v572 = vsel %vm570, %v567, %v569
      %575 = vrot.lane.b32.xlu0 %v483, 111
      %v576 = vpop.permute.xlu0 %575
      %577 = vrot.lane.b32.xlu0 %v484, 111
      %v578 = vpop.permute.xlu0 %577
      %579 = vrot.lane.b32.xlu0 %v491, 111
      %v580 = vpop.permute.xlu0 %579
      %vm581 = vcmask 908288
      %v582 = vsel %vm581, %v576, %v578
      %v583 = vsel %vm581, %v578, %v580
      %586 = vrot.lane.b32.xlu0 %v483, 95
      %v587 = vpop.permute.xlu0 %586
      %588 = vrot.lane.b32.xlu0 %v484, 95
      %v589 = vpop.permute.xlu0 %588
      %590 = vrot.lane.b32.xlu0 %v491, 95
      %v591 = vpop.permute.xlu0 %590
      %vm592 = vcmask 777216
      %v593 = vsel %vm592, %v587, %v589
      %v594 = vsel %vm592, %v589, %v591
      %v597 = vld [vmem:[%s4] sm:$0xf]
      %vm598 = vcmask 588800
      %v600 = vsel %vm598, %v597, 0
      %602 = vmatpush.msra.mxu0 0.0
      %603 = vmatpush.msra.mxu0 0.0
      %604 = vmatpush.msra.mxu0 0.0
      %605 = vmatpush.msra.mxu0 0.0
      %606 = vmatpush.msra.mxu0 0.0
      %607 = vmatpush.msra.mxu0 0.0
      %608 = vmatpush.msra.mxu0 0.0
      %609 = vmatpush.msra.mxu0 %v562
      %610 = vmatpush.msra.mxu0 %v593
      %611 = vmatpush.msra.mxu0 %v549
      %612 = vmatpush.msra.mxu0 %v536
      %613 = vmatpush.msra.mxu0 %v582
      %614 = vmatpush.msra.mxu0 %v523
      %615 = vmatpush.msra.mxu0 %v510
      %616 = vmatpush.msra.mxu0 %v571
      %617 = vmatpush.msra.mxu0 %v489
      %618 = vmatmul.f32.gmra.mxu0 %v600
      %v619 = vpop.f32.mrf.mxu0
      %v620 = vadd.f32 0.0, %v619
      %621 = vdwg.mxu0
      %622 = vmatpush.msra.mxu0 0.0
      %623 = vmatpush.msra.mxu0 0.0
      %624 = vmatpush.msra.mxu0 0.0
      %625 = vmatpush.msra.mxu0 0.0
      %626 = vmatpush.msra.mxu0 0.0
      %627 = vmatpush.msra.mxu0 0.0
      %628 = vmatpush.msra.mxu0 0.0
      %629 = vmatpush.msra.mxu0 %v563
      %630 = vmatpush.msra.mxu0 %v594
      %631 = vmatpush.msra.mxu0 %v550
      %632 = vmatpush.msra.mxu0 %v537
      %633 = vmatpush.msra.mxu0 %v583
      %634 = vmatpush.msra.mxu0 %v524
      %635 = vmatpush.msra.mxu0 %v511
      %636 = vmatpush.msra.mxu0 %v572
      %637 = vmatpush.msra.mxu0 %v490
      %638 = vmatmul.f32.gmra.mxu0 %v600
      %v639 = vpop.f32.mrf.mxu0
      %v640 = vadd.f32 0.0, %v639
      %641 = vdwg.mxu0
      %v642 = vld [vmem:[%s5] sm:$0xf]
      %644 = vset.pattern.permute.xlu0 0
      %645 = vperm.xlu0 %644, %v642
      %v646 = vpop.permute.xlu0 %645
      %v648 = vmul.f32 %v620, %v646
      %v649 = vmul.f32 %v640, %v646
      %v650 = vld [vmem:[%s6] sm:$0xf]
      %652 = vset.pattern.permute.xlu0 0
      %653 = vperm.xlu0 %652, %v650
      %v654 = vpop.permute.xlu0 %653
      %v656 = vadd.f32 %v648, %v654
      %v657 = vadd.f32 %v649, %v654
      %v658 = vmax.f32 %v656, 0.0
      %v659 = vmax.f32 %v657, 0.0
      %660 = vst [vmem:[#allocation3] sm:$0xff] 0.0
      %vm661 = vcmask 273408
      %662 = vst.msk [vmem:[#allocation3 + $0x8] sm:$0xf] %vm661, 0.0
      %v665 = vrot.slane %v659, 4
      %v666 = vsel %vm401, %v658, %v665
      %667 = vrot.lane.b32.xlu0 %v666, 17
      %v668 = vpop.permute.xlu0 %667
      %v669 = vrot.slane %v668, 4
      %v670 = vsel %vm474, %v669, %v668
      %vm673 = vcmask 1043592
      %vm674 = vcmask 1047556
      %vm675 = vmor %vm674, %vm673
      %676 = vst.msk [vmem:[#allocation3] sm:$0xff] %vm675, %v670
      %vm677 = vcmask 134144
      %678 = vst.msk [vmem:[#allocation3 + $0x8] sm:$0xf] %vm677, %v669
      %v679 = vld [vmem:[#allocation3] sm:$0xff]
      %681 = vst [vmem:[#allocation1] ss:$2 sm:$0xff] %v679
      %v682 = vld.sshfl [vmem:[#allocation1] sm:$0xff pattern:$0x75316420]
      %v683 = vld.sshfl [vmem:[#allocation1 + $0x8] sm:$0xff pattern:$0x75316420]
      %v686 = vsel %vm487, %v682, 0.0
      %v687 = vsel %vm488, %v683, 0.0
      %v688 = vld [vmem:[#allocation3] sm:$0xff]
      %v689 = vld [vmem:[#allocation3 + $0x8] sm:$0xf]
      %692 = vst [vmem:[#allocation1] ss:$2 sm:$0xff] %v688
      %s693 = scalar_lea.vmem [#allocation1], 16
      %694 = vst [vmem:[%s693] ss:$2 sm:$0xff] %v689
      %v695 = vld.sshfl [vmem:[#allocation1] sm:$0xff pattern:$0x75316420]
      %v696 = vld.sshfl [vmem:[#allocation1 + $0x8] sm:$0xff pattern:$0x75316420]
      %v697 = vld.sshfl [vmem:[#allocation1 + $0x10] sm:$0xff pattern:$0x75316420]
      %698 = vrot.lane.b32.xlu0 %v695, 126
      %v699 = vpop.permute.xlu0 %698
      %700 = vrot.lane.b32.xlu0 %v696, 126
      %v701 = vpop.permute.xlu0 %700
      %702 = vrot.lane.b32.xlu0 %v697, 126
      %v703 = vpop.permute.xlu0 %702
      %v704 = vsel %vm505, %v699, %v701
      %v705 = vsel %vm505, %v701, %v703
      %v708 = vsel %vm494, %v704, 0.0
      %v709 = vsel %vm495, %v705, 0.0
      %v710 = vld [vmem:[#allocation3] sm:$0xff]
      %v711 = vld [vmem:[#allocation3 + $0x8] sm:$0xf]
      %714 = vst [vmem:[#allocation1] ss:$2 sm:$0xff] %v710
      %s715 = scalar_lea.vmem [#allocation1], 16
      %716 = vst [vmem:[%s715] ss:$2 sm:$0xff] %v711
      %v717 = vld.sshfl [vmem:[#allocation1] sm:$0xff pattern:$0x75316420]
      %v718 = vld.sshfl [vmem:[#allocation1 + $0x8] sm:$0xff pattern:$0x75316420]
      %v719 = vld.sshfl [vmem:[#allocation1 + $0x10] sm:$0xff pattern:$0x75316420]
      %720 = vrot.lane.b32.xlu0 %v717, 112
      %v721 = vpop.permute.xlu0 %720
      %722 = vrot.lane.b32.xlu0 %v718, 112
      %v723 = vpop.permute.xlu0 %722
      %724 = vrot.lane.b32.xlu0 %v719, 112
      %v725 = vpop.permute.xlu0 %724
      %v726 = vsel %vm518, %v721, %v723
      %v727 = vsel %vm518, %v723, %v725
      %v730 = vsel %vm487, %v726, 0.0
      %v731 = vsel %vm488, %v727, 0.0
      %v732 = vld [vmem:[#allocation3] sm:$0xff]
      %v733 = vld [vmem:[#allocation3 + $0x8] sm:$0xf]
      %736 = vst [vmem:[#allocation1] ss:$2 sm:$0xff] %v732
      %s737 = scalar_lea.vmem [#allocation1], 16
      %738 = vst [vmem:[%s737] ss:$2 sm:$0xff] %v733
      %v739 = vld.sshfl [vmem:[#allocation1] sm:$0xff pattern:$0x75316420]
      %v740 = vld.sshfl [vmem:[#allocation1 + $0x8] sm:$0xff pattern:$0x75316420]
      %v741 = vld.sshfl [vmem:[#allocation1 + $0x10] sm:$0xff pattern:$0x75316420]
      %742 = vrot.lane.b32.xlu0 %v739, 110
      %v743 = vpop.permute.xlu0 %742
      %744 = vrot.lane.b32.xlu0 %v740, 110
      %v745 = vpop.permute.xlu0 %744
      %746 = vrot.lane.b32.xlu0 %v741, 110
      %v747 = vpop.permute.xlu0 %746
      %v748 = vsel %vm531, %v743, %v745
      %v749 = vsel %vm531, %v745, %v747
      %v752 = vsel %vm494, %v748, 0.0
      %v753 = vsel %vm495, %v749, 0.0
      %v754 = vld [vmem:[#allocation3] sm:$0xff]
      %v755 = vld [vmem:[#allocation3 + $0x8] sm:$0xf]
      %758 = vst [vmem:[#allocation1] ss:$2 sm:$0xff] %v754
      %s759 = scalar_lea.vmem [#allocation1], 16
      %760 = vst [vmem:[%s759] ss:$2 sm:$0xff] %v755
      %v761 = vld.sshfl [vmem:[#allocation1] sm:$0xff pattern:$0x75316420]
      %v762 = vld.sshfl [vmem:[#allocation1 + $0x8] sm:$0xff pattern:$0x75316420]
      %v763 = vld.sshfl [vmem:[#allocation1 + $0x10] sm:$0xff pattern:$0x75316420]
      %764 = vrot.lane.b32.xlu0 %v761, 96
      %v765 = vpop.permute.xlu0 %764
      %766 = vrot.lane.b32.xlu0 %v762, 96
      %v767 = vpop.permute.xlu0 %766
      %768 = vrot.lane.b32.xlu0 %v763, 96
      %v769 = vpop.permute.xlu0 %768
      %v770 = vsel %vm544, %v765, %v767
      %v771 = vsel %vm544, %v767, %v769
      %v774 = vsel %vm487, %v770, 0.0
      %v775 = vsel %vm488, %v771, 0.0
      %v776 = vld [vmem:[#allocation3] sm:$0xff]
      %v777 = vld [vmem:[#allocation3 + $0x8] sm:$0xf]
      %780 = vst [vmem:[#allocation1] ss:$2 sm:$0xff] %v776
      %s781 = scalar_lea.vmem [#allocation1], 16
      %782 = vst [vmem:[%s781] ss:$2 sm:$0xff] %v777
      %v783 = vld.sshfl [vmem:[#allocation1] sm:$0xff pattern:$0x75316420]
      %v784 = vld.sshfl [vmem:[#allocation1 + $0x8] sm:$0xff pattern:$0x75316420]
      %v785 = vld.sshfl [vmem:[#allocation1 + $0x10] sm:$0xff pattern:$0x75316420]
      %786 = vrot.lane.b32.xlu0 %v783, 94
      %v787 = vpop.permute.xlu0 %786
      %788 = vrot.lane.b32.xlu0 %v784, 94
      %v789 = vpop.permute.xlu0 %788
      %790 = vrot.lane.b32.xlu0 %v785, 94
      %v791 = vpop.permute.xlu0 %790
      %v792 = vsel %vm557, %v787, %v789
      %v793 = vsel %vm557, %v789, %v791
      %v796 = vsel %vm494, %v792, 0.0
      %v797 = vsel %vm495, %v793, 0.0
      %s798 = scalar_lea.vmem [#allocation1], 1
      %799 = vst [vmem:[%s798] ss:$2 sm:$0xff] %v688
      %s800 = scalar_lea.vmem [#allocation1], 17
      %801 = vst [vmem:[%s800] ss:$2 sm:$0xff] %v689
      %v802 = vld.sshfl [vmem:[#allocation1] sm:$0xff pattern:$0x75316420]
      %v803 = vld.sshfl [vmem:[#allocation1 + $0x8] sm:$0xff pattern:$0x75316420]
      %v804 = vld.sshfl [vmem:[#allocation1 + $0x10] sm:$0xff pattern:$0x75316420]
      %805 = vrot.lane.b32.xlu0 %v802, 127
      %v806 = vpop.permute.xlu0 %805
      %807 = vrot.lane.b32.xlu0 %v803, 127
      %v808 = vpop.permute.xlu0 %807
      %809 = vrot.lane.b32.xlu0 %v804, 127
      %v810 = vpop.permute.xlu0 %809
      %v811 = vsel %vm570, %v806, %v808
      %v812 = vsel %vm570, %v808, %v810
      %v817 = vrot.slane %v730, 4
      %v818 = vrot.slane %v731, 4
      %821 = vst [vmem:[#allocation1] ss:$2 sm:$0xff] %v732
      %s822 = scalar_lea.vmem [#allocation1], 16
      %823 = vst [vmem:[%s822] ss:$2 sm:$0xff] %v733
      %v824 = vld.sshfl [vmem:[#allocation1] sm:$0xff pattern:$0x75316420]
      %v825 = vld.sshfl [vmem:[#allocation1 + $0x8] sm:$0xff pattern:$0x75316420]
      %v826 = vld.sshfl [vmem:[#allocation1 + $0x10] sm:$0xff pattern:$0x75316420]
      %827 = vrot.lane.b32.xlu0 %v824, 111
      %v828 = vpop.permute.xlu0 %827
      %829 = vrot.lane.b32.xlu0 %v825, 111
      %v830 = vpop.permute.xlu0 %829
      %831 = vrot.lane.b32.xlu0 %v826, 111
      %v832 = vpop.permute.xlu0 %831
      %v833 = vsel %vm581, %v828, %v830
      %v834 = vsel %vm581, %v830, %v832
      %v839 = vrot.slane %v752, 4
      %v840 = vrot.slane %v753, 4
      %s843 = scalar_lea.vmem [#allocation1], 1
      %844 = vst [vmem:[%s843] ss:$2 sm:$0xff] %v776
      %s845 = scalar_lea.vmem [#allocation1], 17
      %846 = vst [vmem:[%s845] ss:$2 sm:$0xff] %v777
      %v847 = vld.sshfl [vmem:[#allocation1] sm:$0xff pattern:$0x75316420]
      %v848 = vld.sshfl [vmem:[#allocation1 + $0x8] sm:$0xff pattern:$0x75316420]
      %v849 = vld.sshfl [vmem:[#allocation1 + $0x10] sm:$0xff pattern:$0x75316420]
      %850 = vrot.lane.b32.xlu0 %v847, 95
      %v851 = vpop.permute.xlu0 %850
      %852 = vrot.lane.b32.xlu0 %v848, 95
      %v853 = vpop.permute.xlu0 %852
      %854 = vrot.lane.b32.xlu0 %v849, 95
      %v855 = vpop.permute.xlu0 %854
      %v856 = vsel %vm592, %v851, %v853
      %v857 = vsel %vm592, %v853, %v855
      %v860 = vsel %vm401, %v686, %v811
      %v861 = vsel %vm401, %v687, %v812
      %v862 = vsel %vm401, %v708, %v817
      %v863 = vsel %vm401, %v709, %v818
      %v864 = vsel %vm401, %v833, %v839
      %v865 = vsel %vm401, %v834, %v840
      %v866 = vsel %vm401, %v774, %v856
      %v867 = vsel %vm401, %v775, %v857
      %v868 = vld [vmem:[%s7] sm:$0xf]
      %vm869 = vcmask 293888
      %v871 = vsel %vm869, %v868, 0
      %v874 = vsel %vm401, %v796, 0
      %v877 = vsel %vm401, %v797, 0
      %879 = vmatpush.msra.mxu0 0.0
      %880 = vmatpush.msra.mxu0 0.0
      %881 = vmatpush.msra.mxu0 0.0
      %882 = vmatpush.msra.mxu0 0.0
      %883 = vmatpush.msra.mxu0 0.0
      %884 = vmatpush.msra.mxu0 0.0
      %885 = vmatpush.msra.mxu0 0.0
      %886 = vmatpush.msra.mxu0 0.0
      %887 = vmatpush.msra.mxu0 0.0
      %888 = vmatpush.msra.mxu0 0.0
      %889 = vmatpush.msra.mxu0 0.0
      %890 = vmatpush.msra.mxu0 %v874
      %891 = vmatpush.msra.mxu0 %v866
      %892 = vmatpush.msra.mxu0 %v864
      %893 = vmatpush.msra.mxu0 %v862
      %894 = vmatpush.msra.mxu0 %v860
      %895 = vmatmul.f32.gmra.mxu0 %v871
      %v896 = vpop.f32.mrf.mxu0
      %v897 = vadd.f32 0.0, %v896
      %898 = vdwg.mxu0
      %899 = vmatpush.msra.mxu0 0.0
      %900 = vmatpush.msra.mxu0 0.0
      %901 = vmatpush.msra.mxu0 0.0
      %902 = vmatpush.msra.mxu0 0.0
      %903 = vmatpush.msra.mxu0 0.0
      %904 = vmatpush.msra.mxu0 0.0
      %905 = vmatpush.msra.mxu0 0.0
      %906 = vmatpush.msra.mxu0 0.0
      %907 = vmatpush.msra.mxu0 0.0
      %908 = vmatpush.msra.mxu0 0.0
      %909 = vmatpush.msra.mxu0 0.0
      %910 = vmatpush.msra.mxu0 %v877
      %911 = vmatpush.msra.mxu0 %v867
      %912 = vmatpush.msra.mxu0 %v865
      %913 = vmatpush.msra.mxu0 %v863
      %914 = vmatpush.msra.mxu0 %v861
      %915 = vmatmul.f32.gmra.mxu0 %v871
      %v916 = vpop.f32.mrf.mxu0
      %v917 = vadd.f32 0.0, %v916
      %918 = vdwg.mxu0
      %v919 = vld [vmem:[%s8] sm:$0xf]
      %921 = vset.pattern.permute.xlu0 0
      %922 = vperm.xlu0 %921, %v919
      %v923 = vpop.permute.xlu0 %922
      %v925 = vmul.f32 %v897, %v923
      %v926 = vmul.f32 %v917, %v923
      %v927 = vld [vmem:[%s9] sm:$0xf]
      %929 = vset.pattern.permute.xlu0 0
      %930 = vperm.xlu0 %929, %v927
      %v931 = vpop.permute.xlu0 %930
      %v933 = vadd.f32 %v925, %v931
      %v934 = vadd.f32 %v926, %v931
      %v935 = vmax.f32 %v933, 0.0
      %v936 = vmax.f32 %v934, 0.0
      %v939 = vrot.slane %v935, 4
      %v940 = vrot.slane %v936, 4
      %v943 = vsel %vm401, %v658, %v939
      %v944 = vsel %vm401, %v659, %v940
      %945 = vst [vmem:[%s359] sm:$0xff] %v462
      %946 = vst [vmem:[%s359 + $0x8] sm:$0xff] %v463
      %947 = vst [vmem:[%s359 + $0x10] sm:$0xff] %v943
      %948 = vst [vmem:[%s359 + $0x18] sm:$0xff] %v944
      %p949 = scmp.lt.s32.totalorder %s21, 1
      %s950 = scalar_select %p949, %s21, 1
      %s951 = smul.addr %s950, 4
      %s952 = smul.addr %s951, 8
      %s953 = scalar_lea.vmem %s10, %s952
      // Predicated region
      $region61: #{cat_bottleneck_forward.1} parent=59 // pred_check
        %p954 = pneg %p254
      $region62: #{cat_bottleneck_forward.1} parent=59 // pred_check_branch
        %956 = sbr.rel (%p954) target = $region64
      $region63: #{cat_bottleneck_forward.1} parent=59 // pred_region
        _
      $region64: #{cat_bottleneck_forward.1} parent=59 // pred_fallthru
        _
    $region60: #{cat_bottleneck_forward.1} parent=5 // pred_fallthru
      _
    %p957 = scmp.le.s32.totalorder 2, %s16
    // Predicated region
    $region65: #{cat_bottleneck_forward.1} parent=5 // pred_check
      %p958 = pneg %p957
    $region66: #{cat_bottleneck_forward.1} parent=5 // pred_check_branch
      %960 = sbr.rel (%p958) target = $region68
    $region67: #{cat_bottleneck_forward.1} parent=5 // pred_region
      %s961 = ssub.s32 %s16, 2
      // Predicated region
      $region69: #{cat_bottleneck_forward.1} parent=67 // pred_check
        %p962 = pneg %p260
      $region70: #{cat_bottleneck_forward.1} parent=67 // pred_check_branch
        %964 = sbr.rel (%p962) target = $region72
      $region71: #{cat_bottleneck_forward.1} parent=67 // pred_region
        %p965 = scmp.lt.s32.totalorder %s22, 1
        %s966 = scalar_select %p965, %s22, 1
        %s967 = smul.addr %s966, 4
        %s968 = smul.addr %s967, 8
        %s969 = scalar_lea.vmem %s10, %s968
      $region72: #{cat_bottleneck_forward.1} parent=67 // pred_fallthru
        _
    $region68: #{cat_bottleneck_forward.1} parent=5 // pred_fallthru
      _
  $region6: #{cat_bottleneck_forward.1} parent=0 // loop_footer
    %s20 = sadd.s32 1, %s16
  $region7: #{cat_bottleneck_forward.1} parent=0 // loop_footer_branch
    %15 = sbr.rel target = $region3
  $region8: #{cat_bottleneck_forward.1} parent=0 // loop_exit
    _

</llo_original>
